<compile_context>
chip_gen: v7x
topology: tpu7x:2x2x1
jax: 0.10.0
libtpu: 0.0.40
codegen_flags: <defaults>
</compile_context>

<pallas_src>
from functools import partial

import jax
import jax.numpy as jnp
from jax import lax
from jax.experimental import pallas as pl
from jax.experimental.pallas import tpu as pltpu


# ------------------------------ Pallas kernel ------------------------------ #

def _basic_block_kernel(x_ref, w1_ref, b1_ref, w2_ref, b2_ref, out_ref, *, H):
    """Fused BasicBlock for one batch block, fully lane-dense.

    x_ref  : (NB, H, W*Cin)       input tile (compute dtype)
    w1_ref : (3, W*Cin, W*Cout)   conv1 banded weights, BN1 scale folded in
    b1_ref : (1, W*Cout)          folded BN1 bias tiled over W (f32)
    w2_ref : (3, W*Cout, W*Cout)  conv2 banded weights, BN2 scale folded in
    b2_ref : (1, W*Cout)          folded BN2 bias tiled over W (f32)
    out_ref: (NB, H, W*Cout)      output tile
    """
    NB = x_ref.shape[0]
    R = NB * H
    # Leading-dim collapse only: last (lane) dim unchanged, no relayout.
    x2d = x_ref[...].reshape(R, x_ref.shape[2])

    # Per-image row index (images are stacked along the sublane axis).
    row = lax.broadcasted_iota(jnp.int32, (R, 1), 0) % H
    has_up = row >= 1          # row h-1 exists inside the same image
    has_dn = row <= H - 2      # row h+1 exists inside the same image

    def shift_down(y):         # result[r] = y[r-1]  (row 0 becomes zero)
        return jnp.concatenate([jnp.zeros_like(y[:1]), y[:-1]], axis=0)

    def shift_up(y):           # result[r] = y[r+1]  (row R-1 becomes zero)
        return jnp.concatenate([y[1:], jnp.zeros_like(y[:1])], axis=0)

    def conv3x3(inp, w_ref):
        # kh = 1 (same-row) tap: kw taps + width zero-padding are inside the
        # banded weight, so this is a single full-K, full-N matmul.
        acc = jnp.dot(inp, w_ref[1], preferred_element_type=jnp.float32)
        # kh = 0 tap: out[h] += (x[h-1] @ w[0]); masked at top image rows.
        y0 = jnp.dot(inp, w_ref[0], preferred_element_type=jnp.float32)
        acc = acc + jnp.where(has_up, shift_down(y0), 0.0)
        # kh = 2 tap: out[h] += (x[h+1] @ w[2]); masked at bottom image rows.
        y2 = jnp.dot(inp, w_ref[2], preferred_element_type=jnp.float32)
        acc = acc + jnp.where(has_dn, shift_up(y2), 0.0)
        return acc

    # conv1 -> BN1 (scale folded into w1) -> ReLU.  Stays resident (no HBM).
    mid = jnp.maximum(conv3x3(x2d, w1_ref) + b1_ref[...], 0.0)

    # conv2 -> BN2 -> residual add (Cin == Cout) -> ReLU, epilogue in f32.
    y = conv3x3(mid.astype(x2d.dtype), w2_ref) + b2_ref[...]
    y = y + x2d.astype(jnp.float32)
    out_ref[...] = jnp.maximum(y, 0.0).reshape(out_ref.shape).astype(out_ref.dtype)


# --------------------------- weight preprocessing --------------------------- #

def _banded_conv3x3_weights(w_hwio, W):
    """HWIO (3, 3, Ci, Co) -> (3, W*Ci, W*Co) banded block matrices.

    wb[kh, w_in*Ci + ci, w_out*Co + co] = w_hwio[kh, w_in - w_out + 1, ci, co]
    (zero outside the 3-wide band), so a lane-dense activation row (W*Ci)
    times wb[kh] applies the three kw taps including the width zero padding.
    """
    kh3, kw3, Ci, Co = w_hwio.shape
    assert kh3 == 3 and kw3 == 3
    kw = jnp.arange(3)[:, None, None]
    w_in = jnp.arange(W)[None, :, None]
    w_out = jnp.arange(W)[None, None, :]
    sel = (w_in == w_out + kw - 1).astype(w_hwio.dtype)        # (3, W, W)
    wb = jnp.einsum('kiw,hkcd->hicwd', sel, w_hwio)            # (3, W, Ci, W, Co)
    return wb.reshape(3, W * Ci, W * Co)


# ------------------------------ JAX wrapper -------------------------------- #

def basic_block_forward(x_nchw, params, eps=1e-5,
                        compute_dtype=jnp.bfloat16, batch_block=8):
    """BasicBlock forward. x is NCHW (PyTorch convention); output is NCHW."""
    N, Cin, H, W = x_nchw.shape
    Cout = params["conv1_w"].shape[0]
    assert Cin == Cout, "downsample=None requires inplanes == planes"
    assert params["conv1_w"].shape[2:] == (3, 3)

    # NCHW -> NHWC -> lane-dense (N, H, W*C); matmul operands in compute dtype.
    x = jnp.transpose(x_nchw, (0, 2, 3, 1)).reshape(N, H, W * Cin)
    x = x.astype(compute_dtype)

    # Fold inference BatchNorm into per-channel (scale, bias); fold the scale
    # into the conv weights so the in-kernel epilogue is bias-add only.
    s1 = params["bn1_g"] * lax.rsqrt(params["bn1_v"] + eps)
    b1 = params["bn1_b"] - params["bn1_m"] * s1
    s2 = params["bn2_g"] * lax.rsqrt(params["bn2_v"] + eps)
    b2 = params["bn2_b"] - params["bn2_m"] * s2

    # PyTorch OIHW -> HWIO, scale-folded, expanded to banded block matrices.
    w1_hwio = jnp.transpose(params["conv1_w"], (2, 3, 1, 0)) * s1[None, None, None, :]
    w2_hwio = jnp.transpose(params["conv2_w"], (2, 3, 1, 0)) * s2[None, None, None, :]
    w1b = _banded_conv3x3_weights(w1_hwio, W).astype(compute_dtype)
    w2b = _banded_conv3x3_weights(w2_hwio, W).astype(compute_dtype)
    # Biases tiled over W so they are lane-dense (1, W*Cout) adds, kept in f32.
    b1t = jnp.tile(b1, W).reshape(1, W * Cout).astype(jnp.float32)
    b2t = jnp.tile(b2, W).reshape(1, W * Cout).astype(jnp.float32)

    # Batch blocking: largest divisor of N not exceeding batch_block.
    nb = 1
    for d in range(1, min(N, batch_block) + 1):
        if N % d == 0:
            nb = d

    kernel = partial(_basic_block_kernel, H=H)

    itemsize = jnp.dtype(compute_dtype).itemsize
    cost = pl.CostEstimate(
        flops=int(4 * N * H * W * 9 * Cin * Cout),           # two 3x3 convs
        transcendentals=0,
        bytes_accessed=int(N * H * W * Cin * itemsize
                           + N * H * W * Cout * jnp.dtype(x_nchw.dtype).itemsize
                           + (w1b.size + w2b.size) * itemsize
                           + (b1t.size + b2t.size) * 4),
    )

    out_flat = pl.pallas_call(
        kernel,
        out_shape=jax.ShapeDtypeStruct((N, H, W * Cout), x_nchw.dtype),
        grid=(N // nb,),
        in_specs=[
            pl.BlockSpec((nb, H, W * Cin), lambda b: (b, 0, 0)),        # x
            pl.BlockSpec((3, W * Cin, W * Cout), lambda b: (0, 0, 0)),  # w1 banded
            pl.BlockSpec((1, W * Cout), lambda b: (0, 0)),              # bias1
            pl.BlockSpec((3, W * Cout, W * Cout), lambda b: (0, 0, 0)), # w2 banded
            pl.BlockSpec((1, W * Cout), lambda b: (0, 0)),              # bias2
        ],
        out_specs=pl.BlockSpec((nb, H, W * Cout), lambda b: (b, 0, 0)),
        compiler_params=pltpu.CompilerParams(
            dimension_semantics=("parallel",)),
        cost_estimate=cost,
    )(x, w1b, b1t, w2b, b2t)

    out = out_flat.reshape(N, H, W, Cout)
    return jnp.transpose(out, (0, 3, 1, 2))                  # -> NCHW


# --------------------------- pure-JAX reference ----------------------------- #

def ref_basic_block(x, params, eps=1e-5):
    def bn(y, g, b, m, v):
        g = g[None, :, None, None]; b = b[None, :, None, None]
        m = m[None, :, None, None]; v = v[None, :, None, None]
        return (y - m) / jnp.sqrt(v + eps) * g + b

    dn = ("NCHW", "OIHW", "NCHW")
    out = lax.conv_general_dilated(x, params["conv1_w"], (1, 1), "SAME",
                                   dimension_numbers=dn)
    out = jnp.maximum(bn(out, params["bn1_g"], params["bn1_b"],
                         params["bn1_m"], params["bn1_v"]), 0.0)
    out = lax.conv_general_dilated(out, params["conv2_w"], (1, 1), "SAME",
                                   dimension_numbers=dn)
    out = bn(out, params["bn2_g"], params["bn2_b"],
             params["bn2_m"], params["bn2_v"]) + x
    return jnp.maximum(out, 0.0)


# ---------------------------------- main ------------------------------------ #

if __name__ == "__main__":
    N, inplanes, planes, H, W = 2, 8, 8, 16, 16      # W * C = 128 (one lane group)

    key = jax.random.PRNGKey(0)
    keys = jax.random.split(key, 12)
    params = {
        "conv1_w": jax.random.normal(keys[0], (planes, inplanes, 3, 3),
                                     jnp.float32) * 0.1,
        "conv2_w": jax.random.normal(keys[1], (planes, planes, 3, 3),
                                     jnp.float32) * 0.1,
        "bn1_g": 1.0 + 0.1 * jax.random.normal(keys[2], (planes,), jnp.float32),
        "bn1_b": 0.1 * jax.random.normal(keys[3], (planes,), jnp.float32),
        "bn1_m": 0.1 * jax.random.normal(keys[4], (planes,), jnp.float32),
        "bn1_v": 0.5 + jnp.abs(jax.random.normal(keys[5], (planes,), jnp.float32)),
        "bn2_g": 1.0 + 0.1 * jax.random.normal(keys[6], (planes,), jnp.float32),
        "bn2_b": 0.1 * jax.random.normal(keys[7], (planes,), jnp.float32),
        "bn2_m": 0.1 * jax.random.normal(keys[8], (planes,), jnp.float32),
        "bn2_v": 0.5 + jnp.abs(jax.random.normal(keys[9], (planes,), jnp.float32)),
    }

    x = jax.random.normal(keys[10], (N, inplanes, H, W), jnp.float32)

    ref = jax.block_until_ready(ref_basic_block(x, params))

    # Exact-math check (f32 matmul operands).
    out_f32 = jax.block_until_ready(
        basic_block_forward(x, params, compute_dtype=jnp.float32))
    assert out_f32.shape == ref.shape == (N, planes, H, W)
    assert jnp.max(jnp.abs(out_f32 - ref)) < 2e-4, "f32 mismatch vs reference"

    # bf16 matmul operands (v6e/v7x recommendation), f32 accumulate/epilogue.
    out_bf16 = jax.block_until_ready(
        basic_block_forward(x, params, compute_dtype=jnp.bfloat16))
    assert out_bf16.shape == ref.shape
    assert jnp.max(jnp.abs(out_bf16 - ref)) < 0.15, "bf16 mismatch vs reference"

    print("KERNEL_OK")
</pallas_src>

<mosaic_0001>
module attributes {stable_mosaic.version = 11 : i64} {
  func.func @_basic_block_kernel(%arg0: i32, %arg1: memref<2x16x128xf32, #tpu.memory_space<vmem>>, %arg2: memref<3x128x128xf32, #tpu.memory_space<vmem>>, %arg3: memref<1x128xf32, #tpu.memory_space<vmem>>, %arg4: memref<3x128x128xf32, #tpu.memory_space<vmem>>, %arg5: memref<1x128xf32, #tpu.memory_space<vmem>>, %arg6: memref<2x16x128xf32, #tpu.memory_space<vmem>>) attributes {dimension_semantics = [#tpu.dimension_semantics<parallel>], iteration_bounds = array<i64: 1>, scalar_prefetch = 0 : i64, scratch_operands = 0 : i64, tpu.core_type = #tpu.core_type<tc>, window_params = [{transform_indices = @transform_0, window_bounds = array<i64: 2, 16, 128>}, {pipeline_mode = #tpu.pipeline_mode<synchronous>, transform_indices = @transform_1, window_bounds = array<i64: 3, 128, 128>}, {pipeline_mode = #tpu.pipeline_mode<synchronous>, transform_indices = @transform_2, window_bounds = array<i64: 1, 128>}, {pipeline_mode = #tpu.pipeline_mode<synchronous>, transform_indices = @transform_3, window_bounds = array<i64: 3, 128, 128>}, {pipeline_mode = #tpu.pipeline_mode<synchronous>, transform_indices = @transform_4, window_bounds = array<i64: 1, 128>}, {transform_indices = @transform_5, window_bounds = array<i64: 2, 16, 128>}]} {
    %c0 = arith.constant 0 : index
    %c0_0 = arith.constant 0 : index
    %c0_1 = arith.constant 0 : index
    %0 = vector.load %arg1[%c0, %c0_0, %c0_1] : memref<2x16x128xf32, #tpu.memory_space<vmem>>, vector<2x16x128xf32>
    %1 = vector.shape_cast %0 : vector<2x16x128xf32> to vector<32x128xf32>
    %2 = tpu.iota {dimensions = array<i32: 0>} : vector<32x1xi32>
    %c16_i32 = arith.constant 16 : i32
    %c0_i32 = arith.constant 0 : i32
    %3 = arith.cmpi eq, %c16_i32, %c0_i32 : i32
    %c1_i32 = arith.constant 1 : i32
    %4 = arith.select %3, %c1_i32, %c16_i32 : i32
    %5 = vector.broadcast %4 : i32 to vector<32x1xi32>
    %6 = arith.remsi %2, %5 : vector<32x1xi32>
    %c0_i32_2 = arith.constant 0 : i32
    %7 = vector.broadcast %c0_i32_2 : i32 to vector<32x1xi32>
    %8 = arith.cmpi ne, %6, %7 : vector<32x1xi32>
    %c0_i32_3 = arith.constant 0 : i32
    %9 = vector.broadcast %c0_i32_3 : i32 to vector<32x1xi32>
    %10 = arith.cmpi slt, %6, %9 : vector<32x1xi32>
    %c0_i32_4 = arith.constant 0 : i32
    %11 = arith.cmpi slt, %4, %c0_i32_4 : i32
    %12 = vector.broadcast %11 : i1 to vector<32x1xi1>
    %13 = vector.broadcast %12 : vector<32x1xi1> to vector<32x1xi1>
    %14 = arith.xori %10, %13 : vector<32x1xi1>
    %15 = arith.andi %14, %8 : vector<32x1xi1>
    %16 = vector.broadcast %4 : i32 to vector<32x1xi32>
    %17 = arith.addi %6, %16 : vector<32x1xi32>
    %18 = arith.select %15, %17, %6 : vector<32x1xi1>, vector<32x1xi32>
    %c1_i32_5 = arith.constant 1 : i32
    %19 = vector.broadcast %c1_i32_5 : i32 to vector<32x1xi32>
    %20 = arith.cmpi sge, %18, %19 : vector<32x1xi32>
    %c14_i32 = arith.constant 14 : i32
    %21 = vector.broadcast %c14_i32 : i32 to vector<32x1xi32>
    %22 = arith.cmpi sle, %18, %21 : vector<32x1xi32>
    %c1 = arith.constant 1 : index
    %c0_6 = arith.constant 0 : index
    %c0_7 = arith.constant 0 : index
    %23 = vector.load %arg2[%c1, %c0_6, %c0_7] : memref<3x128x128xf32, #tpu.memory_space<vmem>>, vector<1x128x128xf32>
    %24 = vector.shape_cast %23 : vector<1x128x128xf32> to vector<128x128xf32>
    %cst = arith.constant dense<0.000000e+00> : vector<32x128xf32>
    %25 = tpu.matmul %1, %24, %cst {dimension_numbers = #tpu.dot_dimension_numbers<[1], [0], [0], [1], [0, 0, 1, 1], [], []>} : vector<32x128xf32>, vector<128x128xf32>, vector<32x128xf32> -> vector<32x128xf32>
    %c0_8 = arith.constant 0 : index
    %c0_9 = arith.constant 0 : index
    %c0_10 = arith.constant 0 : index
    %26 = vector.load %arg2[%c0_8, %c0_9, %c0_10] : memref<3x128x128xf32, #tpu.memory_space<vmem>>, vector<1x128x128xf32>
    %27 = vector.shape_cast %26 : vector<1x128x128xf32> to vector<128x128xf32>
    %cst_11 = arith.constant dense<0.000000e+00> : vector<32x128xf32>
    %28 = tpu.matmul %1, %27, %cst_11 {dimension_numbers = #tpu.dot_dimension_numbers<[1], [0], [0], [1], [0, 0, 1, 1], [], []>} : vector<32x128xf32>, vector<128x128xf32>, vector<32x128xf32> -> vector<32x128xf32>
    %cst_12 = arith.constant 0.000000e+00 : f32
    %29 = vector.broadcast %cst_12 : f32 to vector<1x128xf32>
    %30 = vector.extract_strided_slice %28 {offsets = [0, 0], sizes = [31, 128], strides = [1, 1]} : vector<32x128xf32> to vector<31x128xf32>
    %31 = tpu.concatenate %29, %30 in 0 : vector<1x128xf32>, vector<31x128xf32> -> vector<32x128xf32>
    %cst_13 = arith.constant 0.000000e+00 : f32
    %32 = vector.shape_cast %20 : vector<32x1xi1> to vector<32x1xi1>
    %33 = vector.broadcast %32 : vector<32x1xi1> to vector<32x128xi1>
    %34 = vector.broadcast %cst_13 : f32 to vector<32x128xf32>
    %35 = arith.select %33, %31, %34 : vector<32x128xi1>, vector<32x128xf32>
    %36 = arith.addf %25, %35 : vector<32x128xf32>
    %c2 = arith.constant 2 : index
    %c0_14 = arith.constant 0 : index
    %c0_15 = arith.constant 0 : index
    %37 = vector.load %arg2[%c2, %c0_14, %c0_15] : memref<3x128x128xf32, #tpu.memory_space<vmem>>, vector<1x128x128xf32>
    %38 = vector.shape_cast %37 : vector<1x128x128xf32> to vector<128x128xf32>
    %cst_16 = arith.constant dense<0.000000e+00> : vector<32x128xf32>
    %39 = tpu.matmul %1, %38, %cst_16 {dimension_numbers = #tpu.dot_dimension_numbers<[1], [0], [0], [1], [0, 0, 1, 1], [], []>} : vector<32x128xf32>, vector<128x128xf32>, vector<32x128xf32> -> vector<32x128xf32>
    %40 = vector.extract_strided_slice %39 {offsets = [1, 0], sizes = [31, 128], strides = [1, 1]} : vector<32x128xf32> to vector<31x128xf32>
    %cst_17 = arith.constant 0.000000e+00 : f32
    %41 = vector.broadcast %cst_17 : f32 to vector<1x128xf32>
    %42 = tpu.concatenate %40, %41 in 0 : vector<31x128xf32>, vector<1x128xf32> -> vector<32x128xf32>
    %cst_18 = arith.constant 0.000000e+00 : f32
    %43 = vector.shape_cast %22 : vector<32x1xi1> to vector<32x1xi1>
    %44 = vector.broadcast %43 : vector<32x1xi1> to vector<32x128xi1>
    %45 = vector.broadcast %cst_18 : f32 to vector<32x128xf32>
    %46 = arith.select %44, %42, %45 : vector<32x128xi1>, vector<32x128xf32>
    %47 = arith.addf %36, %46 : vector<32x128xf32>
    %c0_19 = arith.constant 0 : index
    %c0_20 = arith.constant 0 : index
    %48 = vector.load %arg3[%c0_19, %c0_20] : memref<1x128xf32, #tpu.memory_space<vmem>>, vector<1x128xf32>
    %49 = vector.broadcast %48 : vector<1x128xf32> to vector<32x128xf32>
    %50 = arith.addf %47, %49 : vector<32x128xf32>
    %cst_21 = arith.constant 0.000000e+00 : f32
    %51 = vector.broadcast %cst_21 : f32 to vector<32x128xf32>
    %52 = arith.maximumf %50, %51 : vector<32x128xf32>
    %c1_22 = arith.constant 1 : index
    %c0_23 = arith.constant 0 : index
    %c0_24 = arith.constant 0 : index
    %53 = vector.load %arg4[%c1_22, %c0_23, %c0_24] : memref<3x128x128xf32, #tpu.memory_space<vmem>>, vector<1x128x128xf32>
    %54 = vector.shape_cast %53 : vector<1x128x128xf32> to vector<128x128xf32>
    %cst_25 = arith.constant dense<0.000000e+00> : vector<32x128xf32>
    %55 = tpu.matmul %52, %54, %cst_25 {dimension_numbers = #tpu.dot_dimension_numbers<[1], [0], [0], [1], [0, 0, 1, 1], [], []>} : vector<32x128xf32>, vector<128x128xf32>, vector<32x128xf32> -> vector<32x128xf32>
    %c0_26 = arith.constant 0 : index
    %c0_27 = arith.constant 0 : index
    %c0_28 = arith.constant 0 : index
    %56 = vector.load %arg4[%c0_26, %c0_27, %c0_28] : memref<3x128x128xf32, #tpu.memory_space<vmem>>, vector<1x128x128xf32>
    %57 = vector.shape_cast %56 : vector<1x128x128xf32> to vector<128x128xf32>
    %cst_29 = arith.constant dense<0.000000e+00> : vector<32x128xf32>
    %58 = tpu.matmul %52, %57, %cst_29 {dimension_numbers = #tpu.dot_dimension_numbers<[1], [0], [0], [1], [0, 0, 1, 1], [], []>} : vector<32x128xf32>, vector<128x128xf32>, vector<32x128xf32> -> vector<32x128xf32>
    %cst_30 = arith.constant 0.000000e+00 : f32
    %59 = vector.broadcast %cst_30 : f32 to vector<1x128xf32>
    %60 = vector.extract_strided_slice %58 {offsets = [0, 0], sizes = [31, 128], strides = [1, 1]} : vector<32x128xf32> to vector<31x128xf32>
    %61 = tpu.concatenate %59, %60 in 0 : vector<1x128xf32>, vector<31x128xf32> -> vector<32x128xf32>
    %cst_31 = arith.constant 0.000000e+00 : f32
    %62 = vector.shape_cast %20 : vector<32x1xi1> to vector<32x1xi1>
    %63 = vector.broadcast %62 : vector<32x1xi1> to vector<32x128xi1>
    %64 = vector.broadcast %cst_31 : f32 to vector<32x128xf32>
    %65 = arith.select %63, %61, %64 : vector<32x128xi1>, vector<32x128xf32>
    %66 = arith.addf %55, %65 : vector<32x128xf32>
    %c2_32 = arith.constant 2 : index
    %c0_33 = arith.constant 0 : index
    %c0_34 = arith.constant 0 : index
    %67 = vector.load %arg4[%c2_32, %c0_33, %c0_34] : memref<3x128x128xf32, #tpu.memory_space<vmem>>, vector<1x128x128xf32>
    %68 = vector.shape_cast %67 : vector<1x128x128xf32> to vector<128x128xf32>
    %cst_35 = arith.constant dense<0.000000e+00> : vector<32x128xf32>
    %69 = tpu.matmul %52, %68, %cst_35 {dimension_numbers = #tpu.dot_dimension_numbers<[1], [0], [0], [1], [0, 0, 1, 1], [], []>} : vector<32x128xf32>, vector<128x128xf32>, vector<32x128xf32> -> vector<32x128xf32>
    %70 = vector.extract_strided_slice %69 {offsets = [1, 0], sizes = [31, 128], strides = [1, 1]} : vector<32x128xf32> to vector<31x128xf32>
    %cst_36 = arith.constant 0.000000e+00 : f32
    %71 = vector.broadcast %cst_36 : f32 to vector<1x128xf32>
    %72 = tpu.concatenate %70, %71 in 0 : vector<31x128xf32>, vector<1x128xf32> -> vector<32x128xf32>
    %cst_37 = arith.constant 0.000000e+00 : f32
    %73 = vector.shape_cast %22 : vector<32x1xi1> to vector<32x1xi1>
    %74 = vector.broadcast %73 : vector<32x1xi1> to vector<32x128xi1>
    %75 = vector.broadcast %cst_37 : f32 to vector<32x128xf32>
    %76 = arith.select %74, %72, %75 : vector<32x128xi1>, vector<32x128xf32>
    %77 = arith.addf %66, %76 : vector<32x128xf32>
    %c0_38 = arith.constant 0 : index
    %c0_39 = arith.constant 0 : index
    %78 = vector.load %arg5[%c0_38, %c0_39] : memref<1x128xf32, #tpu.memory_space<vmem>>, vector<1x128xf32>
    %79 = vector.broadcast %78 : vector<1x128xf32> to vector<32x128xf32>
    %80 = arith.addf %77, %79 : vector<32x128xf32>
    %81 = arith.addf %80, %1 : vector<32x128xf32>
    %cst_40 = arith.constant 0.000000e+00 : f32
    %82 = vector.broadcast %cst_40 : f32 to vector<32x128xf32>
    %83 = arith.maximumf %81, %82 : vector<32x128xf32>
    %84 = vector.shape_cast %83 : vector<32x128xf32> to vector<2x16x128xf32>
    %c0_41 = arith.constant 0 : index
    %c0_42 = arith.constant 0 : index
    %c0_43 = arith.constant 0 : index
    %85 = vector.load %arg6[%c0_41, %c0_42, %c0_43] : memref<2x16x128xf32, #tpu.memory_space<vmem>>, vector<2x16x128xf32>
    tpu.vector_store %arg6[%c0_41, %c0_42, %c0_43], %84 {strides = array<i32>} : memref<2x16x128xf32, #tpu.memory_space<vmem>>, vector<2x16x128xf32>,
    return
  }
  func.func @transform_0(%arg0: i32) -> (i32, i32, i32) {
    %c0_i32 = arith.constant 0 : i32
    %c0_i32_0 = arith.constant 0 : i32
    %c0_i32_1 = arith.constant 0 : i32
    return %arg0, %c0_i32, %c0_i32_0 : i32, i32, i32
  }
  func.func @transform_1(%arg0: i32) -> (i32, i32, i32) {
    %c0_i32 = arith.constant 0 : i32
    %c0_i32_0 = arith.constant 0 : i32
    %c0_i32_1 = arith.constant 0 : i32
    %c0_i32_2 = arith.constant 0 : i32
    return %c0_i32, %c0_i32_0, %c0_i32_1 : i32, i32, i32
  }
  func.func @transform_2(%arg0: i32) -> (i32, i32) {
    %c0_i32 = arith.constant 0 : i32
    %c0_i32_0 = arith.constant 0 : i32
    %c0_i32_1 = arith.constant 0 : i32
    return %c0_i32, %c0_i32_0 : i32, i32
  }
  func.func @transform_3(%arg0: i32) -> (i32, i32, i32) {
    %c0_i32 = arith.constant 0 : i32
    %c0_i32_0 = arith.constant 0 : i32
    %c0_i32_1 = arith.constant 0 : i32
    %c0_i32_2 = arith.constant 0 : i32
    return %c0_i32, %c0_i32_0, %c0_i32_1 : i32, i32, i32
  }
  func.func @transform_4(%arg0: i32) -> (i32, i32) {
    %c0_i32 = arith.constant 0 : i32
    %c0_i32_0 = arith.constant 0 : i32
    %c0_i32_1 = arith.constant 0 : i32
    return %c0_i32, %c0_i32_0 : i32, i32
  }
  func.func @transform_5(%arg0: i32) -> (i32, i32, i32) {
    %c0_i32 = arith.constant 0 : i32
    %c0_i32_0 = arith.constant 0 : i32
    %c0_i32_1 = arith.constant 0 : i32
    return %arg0, %c0_i32, %c0_i32_0 : i32, i32, i32
  }
}

</mosaic_0001>

<llo_original>
// kernel: tpu_custom_call.1
$region0: #{tpu_custom_call.1}
  #allocation0 [shape = 'u32[]', space=smem, size = 0x4, offset = 0x4, fixed_abs, tag = 'smem constant byte address 0x4 - core index']
  #allocation1 [shape = 'u32[144,128]{1,0:T(1,128)}', space=vmem, size = 0x12000, scoped, tag = 'internal scratch']
  %s0 = inlined_call_operand.hbm [shape: f32[2,16,128], index: 0, kind: input, shape index: {}]
  %s1 = inlined_call_operand.hbm [shape: f32[3,128,128], index: 1, kind: input, shape index: {}]
  %s2 = inlined_call_operand.vmem [shape: f32[1,128], index: 2, kind: input, shape index: {}]
  %s3 = inlined_call_operand.hbm [shape: f32[3,128,128], index: 3, kind: input, shape index: {}]
  %s4 = inlined_call_operand.vmem [shape: f32[1,128], index: 4, kind: input, shape index: {}]
  %s5 = inlined_call_operand.hbm [shape: f32[2,16,128], index: 5, kind: output, shape index: {}]
  %s6 = sld [smem:[#allocation0]]
  $region42: #{tpu_custom_call.1} parent=0
    _
  %s8 = ssub.s32 1, %s6
  %s9 = scalar_select 0, %s8, %s6
  $region1: #{tpu_custom_call.1} parent=0
    #allocation2 [shape = 'u8[16384]{0}', space=vmem, size = 0x4000, scoped, tag = 'input window, operand 0, single buffered']
    #allocation3 [shape = 's32[1]{0}', space=sflag, size = 0x4, scoped, tag = 'scoped memory for tpu_custom_call.1']
    #allocation4 [shape = 's32[1]{0}', space=sflag, size = 0x4, scoped, tag = 'scoped memory for tpu_custom_call.1']
    #allocation5 [shape = 'u8[196608]{0}', space=vmem, size = 0x30000, scoped, tag = 'input window, operand 1, single buffered']
    #allocation6 [shape = 's32[1]{0}', space=sflag, size = 0x4, scoped, tag = 'scoped memory for tpu_custom_call.1']
    #allocation7 [shape = 'u8[196608]{0}', space=vmem, size = 0x30000, scoped, tag = 'input window, operand 3, single buffered']
    #allocation8 [shape = 'u8[16384]{0}', space=vmem, size = 0x4000, scoped, tag = 'output window, operand 0, single buffered']
    %10 = vsyncpa [#allocation3], 0
    %11 = vsyncpa [#allocation6], 0
    %12 = vsyncpa [#allocation4], 0
    // Predicated region
    $region2: #{tpu_custom_call.1} parent=1 // pred_check
      _
    $region3: #{tpu_custom_call.1} parent=1 // pred_check_branch
      %14 = sbr.rel (0) target = $region5
    $region4: #{tpu_custom_call.1} parent=1 // pred_region
      %s16 = ssub.s32 512, 512
      %17 = vsyncadd [#allocation3], %s16
      %s18 = sshll.u32 [#allocation2], 4
      %s19 = int_to_ptr.vmem [resolvable:$true] %s18
      %24 = dma.hbm_to_vmem [thread:$0]  %s0, 512, %s19, [#allocation3], 128, 128, 8
    $region5: #{tpu_custom_call.1} parent=1 // pred_fallthru
      _
    // Predicated region
    $region6: #{tpu_custom_call.1} parent=1 // pred_check
      _
    $region7: #{tpu_custom_call.1} parent=1 // pred_check_branch
      %26 = sbr.rel (0) target = $region9
    $region8: #{tpu_custom_call.1} parent=1 // pred_region
      %s28 = ssub.s32 6144, 6144
      %29 = vsyncadd [#allocation6], %s28
      %s30 = sshll.u32 [#allocation5], 4
      %s31 = int_to_ptr.vmem [resolvable:$true] %s30
      %36 = dma.hbm_to_vmem [thread:$0]  %s1, 6144, %s31, [#allocation6], 128, 128, 8
    $region9: #{tpu_custom_call.1} parent=1 // pred_fallthru
      _
    // Predicated region
    $region10: #{tpu_custom_call.1} parent=1 // pred_check
      _
    $region11: #{tpu_custom_call.1} parent=1 // pred_check_branch
      %38 = sbr.rel (0) target = $region13
    $region12: #{tpu_custom_call.1} parent=1 // pred_region
      _
    $region13: #{tpu_custom_call.1} parent=1 // pred_fallthru
      _
    // Predicated region
    $region14: #{tpu_custom_call.1} parent=1 // pred_check
      _
    $region15: #{tpu_custom_call.1} parent=1 // pred_check_branch
      %40 = sbr.rel (0) target = $region17
    $region16: #{tpu_custom_call.1} parent=1 // pred_region
      %s42 = ssub.s32 6144, 6144
      %43 = vsyncadd [#allocation6], %s42
      %s44 = sshll.u32 [#allocation7], 4
      %s45 = int_to_ptr.vmem [resolvable:$true] %s44
      %50 = dma.hbm_to_vmem [thread:$0]  %s3, 6144, %s45, [#allocation6], 128, 128, 8
    $region17: #{tpu_custom_call.1} parent=1 // pred_fallthru
      _
    // Predicated region
    $region18: #{tpu_custom_call.1} parent=1 // pred_check
      _
    $region19: #{tpu_custom_call.1} parent=1 // pred_check_branch
      %52 = sbr.rel (0) target = $region21
    $region20: #{tpu_custom_call.1} parent=1 // pred_region
      _
    $region21: #{tpu_custom_call.1} parent=1 // pred_fallthru
      _
    // Predicated region
    $region22: #{tpu_custom_call.1} parent=1 // pred_check
      _
    $region23: #{tpu_custom_call.1} parent=1 // pred_check_branch
      %54 = sbr.rel (0) target = $region25
    $region24: #{tpu_custom_call.1} parent=1 // pred_region
      %55 = dma.done [#allocation3], 512
    $region25: #{tpu_custom_call.1} parent=1 // pred_fallthru
      _
    // Predicated region
    $region26: #{tpu_custom_call.1} parent=1 // pred_check
      _
    $region27: #{tpu_custom_call.1} parent=1 // pred_check_branch
      %57 = sbr.rel (0) target = $region29
    $region28: #{tpu_custom_call.1} parent=1 // pred_region
      %58 = dma.done [#allocation6], 6144
    $region29: #{tpu_custom_call.1} parent=1 // pred_fallthru
      _
    // Predicated region
    $region30: #{tpu_custom_call.1} parent=1 // pred_check
      _
    $region31: #{tpu_custom_call.1} parent=1 // pred_check_branch
      %60 = sbr.rel (0) target = $region33
    $region32: #{tpu_custom_call.1} parent=1 // pred_region
      %61 = dma.done [#allocation6], 6144
    $region33: #{tpu_custom_call.1} parent=1 // pred_fallthru
      _
    %v62 = vld [vmem:[#allocation2] sm:$0xff]
    %v63 = vld [vmem:[#allocation2 + $0x8] sm:$0xff]
    %v64 = vld [vmem:[#allocation2 + $0x10] sm:$0xff]
    %v65 = vld [vmem:[#allocation2 + $0x18] sm:$0xff]
    %v66 = vlaneseq
    %v67 = vshrl.u32 %v66, 7
    %v68 = vadd.s32 %v67, 8
    %v69 = vadd.s32 %v67, 16
    %v70 = vadd.s32 %v67, 24
    %vm71 = vcmp.lt.s32.totalorder %v67, 0
    %v72 = vsub.s32 0, %v67
    %v73 = vsel %vm71, %v72, %v67
    %v74 = vshrl.u32 %v73, 4
    %v75 = vand.u32 %v73, 15
    %v76 = vsub.s32 0, %v75
    %v77 = vsel %vm71, %v76, %v75
    %vm78 = vcmp.lt.s32.totalorder %v68, 0
    %v79 = vsub.s32 0, %v68
    %v80 = vsel %vm78, %v79, %v68
    %v81 = vshrl.u32 %v80, 4
    %v82 = vand.u32 %v80, 15
    %v83 = vsub.s32 0, %v82
    %v84 = vsel %vm78, %v83, %v82
    %vm85 = vcmp.lt.s32.totalorder %v69, 0
    %v86 = vsub.s32 0, %v69
    %v87 = vsel %vm85, %v86, %v69
    %v88 = vshrl.u32 %v87, 4
    %v89 = vand.u32 %v87, 15
    %v90 = vsub.s32 0, %v89
    %v91 = vsel %vm85, %v90, %v89
    %vm92 = vcmp.lt.s32.totalorder %v70, 0
    %v93 = vsub.s32 0, %v70
    %v94 = vsel %vm92, %v93, %v70
    %v95 = vshrl.u32 %v94, 4
    %v96 = vand.u32 %v94, 15
    %v97 = vsub.s32 0, %v96
    %v98 = vsel %vm92, %v97, %v96
    %vm99 = vcmp.ne.s32.totalorder %v77, 0
    %vm100 = vcmp.ne.s32.totalorder %v84, 0
    %vm101 = vcmp.ne.s32.totalorder %v91, 0
    %vm102 = vcmp.ne.s32.totalorder %v98, 0
    %vm103 = vcmp.lt.s32.totalorder %v77, 0
    %vm104 = vcmp.lt.s32.totalorder %v84, 0
    %vm105 = vcmp.lt.s32.totalorder %v91, 0
    %vm106 = vcmp.lt.s32.totalorder %v98, 0
    %vm107 = vmand %vm103, %vm99
    %vm108 = vmand %vm104, %vm100
    %vm109 = vmand %vm105, %vm101
    %vm110 = vmand %vm106, %vm102
    %v111 = vadd.s32 %v77, 16
    %v112 = vadd.s32 %v84, 16
    %v113 = vadd.s32 %v91, 16
    %v114 = vadd.s32 %v98, 16
    %v115 = vsel %vm107, %v111, %v77
    %v116 = vsel %vm108, %v112, %v84
    %v117 = vsel %vm109, %v113, %v91
    %v118 = vsel %vm110, %v114, %v98
    %vm119 = vcmp.ge.s32.totalorder %v115, 1
    %vm120 = vcmp.ge.s32.totalorder %v116, 1
    %vm121 = vcmp.ge.s32.totalorder %v117, 1
    %vm122 = vcmp.ge.s32.totalorder %v118, 1
    %vm123 = vcmp.le.s32.totalorder %v115, 14
    %vm124 = vcmp.le.s32.totalorder %v116, 14
    %vm125 = vcmp.le.s32.totalorder %v117, 14
    %vm126 = vcmp.le.s32.totalorder %v118, 14
    %s127 = scalar_lea.vmem [#allocation5], 128
    %v128 = vld [vmem:[%s127] sm:$0xff]
    %v129 = vld [vmem:[%s127 + $0x8] sm:$0xff]
    %v130 = vld [vmem:[%s127 + $0x10] sm:$0xff]
    %v131 = vld [vmem:[%s127 + $0x18] sm:$0xff]
    %v132 = vld [vmem:[%s127 + $0x20] sm:$0xff]
    %v133 = vld [vmem:[%s127 + $0x28] sm:$0xff]
    %v134 = vld [vmem:[%s127 + $0x30] sm:$0xff]
    %v135 = vld [vmem:[%s127 + $0x38] sm:$0xff]
    %v136 = vld [vmem:[%s127 + $0x40] sm:$0xff]
    %v137 = vld [vmem:[%s127 + $0x48] sm:$0xff]
    %v138 = vld [vmem:[%s127 + $0x50] sm:$0xff]
    %v139 = vld [vmem:[%s127 + $0x58] sm:$0xff]
    %v140 = vld [vmem:[%s127 + $0x60] sm:$0xff]
    %v141 = vld [vmem:[%s127 + $0x68] sm:$0xff]
    %v142 = vld [vmem:[%s127 + $0x70] sm:$0xff]
    %v143 = vld [vmem:[%s127 + $0x78] sm:$0xff]
    %v144 = vld [vmem:[#allocation5] sm:$0xff]
    %v145 = vld [vmem:[#allocation5 + $0x8] sm:$0xff]
    %v146 = vld [vmem:[#allocation5 + $0x10] sm:$0xff]
    %v147 = vld [vmem:[#allocation5 + $0x18] sm:$0xff]
    %v148 = vld [vmem:[#allocation5 + $0x20] sm:$0xff]
    %v149 = vld [vmem:[#allocation5 + $0x28] sm:$0xff]
    %v150 = vld [vmem:[#allocation5 + $0x30] sm:$0xff]
    %v151 = vld [vmem:[#allocation5 + $0x38] sm:$0xff]
    %v152 = vld [vmem:[#allocation5 + $0x40] sm:$0xff]
    %v153 = vld [vmem:[#allocation5 + $0x48] sm:$0xff]
    %v154 = vld [vmem:[#allocation5 + $0x50] sm:$0xff]
    %v155 = vld [vmem:[#allocation5 + $0x58] sm:$0xff]
    %v156 = vld [vmem:[#allocation5 + $0x60] sm:$0xff]
    %v157 = vld [vmem:[#allocation5 + $0x68] sm:$0xff]
    %v158 = vld [vmem:[#allocation5 + $0x70] sm:$0xff]
    %v159 = vld [vmem:[#allocation5 + $0x78] sm:$0xff]
    %160 = vmatprep.subr.mxu0 0.0
    %161 = vmatpush1.msra.mxu0 %v144
    %162 = vmatprep.subr.mxu0 0.0
    %163 = vmatpush1.msra.mxu0 %v145
    %164 = vmatprep.subr.mxu0 0.0
    %165 = vmatpush1.msra.mxu0 %v146
    %166 = vmatprep.subr.mxu0 0.0
    %167 = vmatpush1.msra.mxu0 %v147
    %168 = vmatprep.subr.mxu0 0.0
    %169 = vmatpush1.msra.mxu0 %v148
    %170 = vmatprep.subr.mxu0 0.0
    %171 = vmatpush1.msra.mxu0 %v149
    %172 = vmatprep.subr.mxu0 0.0
    %173 = vmatpush1.msra.mxu0 %v150
    %174 = vmatprep.subr.mxu0 0.0
    %175 = vmatpush1.msra.mxu0 %v151
    %176 = vmatprep.subr.mxu0 0.0
    %177 = vmatpush1.msra.mxu0 %v152
    %178 = vmatprep.subr.mxu0 0.0
    %179 = vmatpush1.msra.mxu0 %v153
    %180 = vmatprep.subr.mxu0 0.0
    %181 = vmatpush1.msra.mxu0 %v154
    %182 = vmatprep.subr.mxu0 0.0
    %183 = vmatpush1.msra.mxu0 %v155
    %184 = vmatprep.subr.mxu0 0.0
    %185 = vmatpush1.msra.mxu0 %v156
    %186 = vmatprep.subr.mxu0 0.0
    %187 = vmatpush1.msra.mxu0 %v157
    %188 = vmatprep.subr.mxu0 0.0
    %189 = vmatpush1.msra.mxu0 %v158
    %190 = vmatprep.subr.mxu0 0.0
    %191 = vmatpush1.msra.mxu0 %v159
    %192 = vmatprep.subr.mxu0 0.0
    %193 = vmatpush1.msra.mxu0 0.0
    %194 = vmatprep.subr.mxu0 0.0
    %195 = vmatpush1.msra.mxu0 0.0
    %196 = vmatprep.subr.mxu0 0.0
    %197 = vmatpush1.msra.mxu0 0.0
    %198 = vmatprep.subr.mxu0 0.0
    %199 = vmatpush1.msra.mxu0 0.0
    %200 = vmatprep.subr.mxu0 0.0
    %201 = vmatpush1.msra.mxu0 0.0
    %202 = vmatprep.subr.mxu0 0.0
    %203 = vmatpush1.msra.mxu0 0.0
    %204 = vmatprep.subr.mxu0 0.0
    %205 = vmatpush1.msra.mxu0 0.0
    %206 = vmatprep.subr.mxu0 0.0
    %207 = vmatpush1.msra.mxu0 0.0
    %208 = vmatprep.subr.mxu0 0.0
    %209 = vmatpush1.msra.mxu0 0.0
    %210 = vmatprep.subr.mxu0 0.0
    %211 = vmatpush1.msra.mxu0 0.0
    %212 = vmatprep.subr.mxu0 0.0
    %213 = vmatpush1.msra.mxu0 0.0
    %214 = vmatprep.subr.mxu0 0.0
    %215 = vmatpush1.msra.mxu0 0.0
    %216 = vmatprep.subr.mxu0 0.0
    %217 = vmatpush1.msra.mxu0 0.0
    %218 = vmatprep.subr.mxu0 0.0
    %219 = vmatpush1.msra.mxu0 0.0
    %220 = vmatprep.subr.mxu0 0.0
    %221 = vmatpush1.msra.mxu0 0.0
    %222 = vmatprep.subr.mxu0 0.0
    %223 = vmatpush1.msra.mxu0 0.0
    %224 = vmatprep.mubr.f32.mxu0 0.0
    %225 = vmatmul.mubr.f32.gmra.mrb[0].mxu0 %v62
    %v226 = vpop.f32.mrb[0].mxu0
    %v227 = vadd.f32 0.0, %v226
    %v228 = vpop.f32.mrb[0].mxu0
    %229 = vmatprep.mubr.f32.mxu0 0.0
    %230 = vmatmul.mubr.f32.gmra.mrb[0].mxu0 %v63
    %v231 = vpop.f32.mrb[0].mxu0
    %v232 = vadd.f32 0.0, %v231
    %v233 = vpop.f32.mrb[0].mxu0
    %234 = vmatprep.mubr.f32.mxu0 0.0
    %235 = vmatmul.mubr.f32.gmra.mrb[0].mxu0 %v64
    %v236 = vpop.f32.mrb[0].mxu0
    %v237 = vadd.f32 0.0, %v236
    %v238 = vpop.f32.mrb[0].mxu0
    %239 = vmatprep.mubr.f32.mxu0 0.0
    %240 = vmatmul.mubr.f32.gmra.mrb[0].mxu0 %v65
    %v241 = vpop.f32.mrb[0].mxu0
    %v242 = vadd.f32 0.0, %v241
    %v243 = vpop.f32.mrb[0].mxu0
    %244 = vdwg.mxu0
    %vm249 = vcmask 1040384
    %v250 = vrot.slane %v227, 7
    %v251 = vrot.slane %v232, 7
    %v252 = vsel %vm249, %v250, %v251
    %v253 = vrot.slane %v237, 7
    %v254 = vsel %vm249, %v251, %v253
    %v255 = vrot.slane %v242, 7
    %v256 = vsel %vm249, %v253, %v255
    %v261 = vsel %vm249, 0.0, %v250
    %v262 = vsel %vm119, 1, 0
    %v263 = vsel %vm120, 1, 0
    %v264 = vsel %vm121, 1, 0
    %v265 = vsel %vm122, 1, 0
    %vm266 = vcmp.eq.s32.totalorder %v262, 1
    %vm267 = vcmp.eq.s32.totalorder %v263, 1
    %vm268 = vcmp.eq.s32.totalorder %v264, 1
    %vm269 = vcmp.eq.s32.totalorder %v265, 1
    %v270 = vsel %vm266, %v261, 0.0
    %v271 = vsel %vm267, %v252, 0.0
    %v272 = vsel %vm268, %v254, 0.0
    %v273 = vsel %vm269, %v256, 0.0
    %274 = vmatprep.subr.mxu0 0.0
    %275 = vmatpush1.msra.mxu0 %v128
    %276 = vmatprep.subr.mxu0 0.0
    %277 = vmatpush1.msra.mxu0 %v129
    %278 = vmatprep.subr.mxu0 0.0
    %279 = vmatpush1.msra.mxu0 %v130
    %280 = vmatprep.subr.mxu0 0.0
    %281 = vmatpush1.msra.mxu0 %v131
    %282 = vmatprep.subr.mxu0 0.0
    %283 = vmatpush1.msra.mxu0 %v132
    %284 = vmatprep.subr.mxu0 0.0
    %285 = vmatpush1.msra.mxu0 %v133
    %286 = vmatprep.subr.mxu0 0.0
    %287 = vmatpush1.msra.mxu0 %v134
    %288 = vmatprep.subr.mxu0 0.0
    %289 = vmatpush1.msra.mxu0 %v135
    %290 = vmatprep.subr.mxu0 0.0
    %291 = vmatpush1.msra.mxu0 %v136
    %292 = vmatprep.subr.mxu0 0.0
    %293 = vmatpush1.msra.mxu0 %v137
    %294 = vmatprep.subr.mxu0 0.0
    %295 = vmatpush1.msra.mxu0 %v138
    %296 = vmatprep.subr.mxu0 0.0
    %297 = vmatpush1.msra.mxu0 %v139
    %298 = vmatprep.subr.mxu0 0.0
    %299 = vmatpush1.msra.mxu0 %v140
    %300 = vmatprep.subr.mxu0 0.0
    %301 = vmatpush1.msra.mxu0 %v141
    %302 = vmatprep.subr.mxu0 0.0
    %303 = vmatpush1.msra.mxu0 %v142
    %304 = vmatprep.subr.mxu0 0.0
    %305 = vmatpush1.msra.mxu0 %v143
    %306 = vmatprep.subr.mxu0 0.0
    %307 = vmatpush1.msra.mxu0 0.0
    %308 = vmatprep.subr.mxu0 0.0
    %309 = vmatpush1.msra.mxu0 0.0
    %310 = vmatprep.subr.mxu0 0.0
    %311 = vmatpush1.msra.mxu0 0.0
    %312 = vmatprep.subr.mxu0 0.0
    %313 = vmatpush1.msra.mxu0 0.0
    %314 = vmatprep.subr.mxu0 0.0
    %315 = vmatpush1.msra.mxu0 0.0
    %316 = vmatprep.subr.mxu0 0.0
    %317 = vmatpush1.msra.mxu0 0.0
    %318 = vmatprep.subr.mxu0 0.0
    %319 = vmatpush1.msra.mxu0 0.0
    %320 = vmatprep.subr.mxu0 0.0
    %321 = vmatpush1.msra.mxu0 0.0
    %322 = vmatprep.subr.mxu0 0.0
    %323 = vmatpush1.msra.mxu0 0.0
    %324 = vmatprep.subr.mxu0 0.0
    %325 = vmatpush1.msra.mxu0 0.0
    %326 = vmatprep.subr.mxu0 0.0
    %327 = vmatpush1.msra.mxu0 0.0
    %328 = vmatprep.subr.mxu0 0.0
    %329 = vmatpush1.msra.mxu0 0.0
    %330 = vmatprep.subr.mxu0 0.0
    %331 = vmatpush1.msra.mxu0 0.0
    %332 = vmatprep.subr.mxu0 0.0
    %333 = vmatpush1.msra.mxu0 0.0
    %334 = vmatprep.subr.mxu0 0.0
    %335 = vmatpush1.msra.mxu0 0.0
    %336 = vmatprep.subr.mxu0 0.0
    %337 = vmatpush1.msra.mxu0 0.0
    %338 = vmatprep.mubr.f32.mxu0 0.0
    %339 = vmatmul.mubr.f32.gmra.mrb[0].mxu0 %v62
    %v340 = vpop.f32.mrb[0].mxu0
    %v341 = vadd.f32 %v270, %v340
    %v342 = vpop.f32.mrb[0].mxu0
    %343 = vmatprep.mubr.f32.mxu0 0.0
    %344 = vmatmul.mubr.f32.gmra.mrb[0].mxu0 %v63
    %v345 = vpop.f32.mrb[0].mxu0
    %v346 = vadd.f32 %v271, %v345
    %v347 = vpop.f32.mrb[0].mxu0
    %348 = vmatprep.mubr.f32.mxu0 0.0
    %349 = vmatmul.mubr.f32.gmra.mrb[0].mxu0 %v64
    %v350 = vpop.f32.mrb[0].mxu0
    %v351 = vadd.f32 %v272, %v350
    %v352 = vpop.f32.mrb[0].mxu0
    %353 = vmatprep.mubr.f32.mxu0 0.0
    %354 = vmatmul.mubr.f32.gmra.mrb[0].mxu0 %v65
    %v355 = vpop.f32.mrb[0].mxu0
    %v356 = vadd.f32 %v273, %v355
    %v357 = vpop.f32.mrb[0].mxu0
    %358 = vdwg.mxu0
    %s359 = scalar_lea.vmem [#allocation5], 256
    %v360 = vld [vmem:[%s359] sm:$0xff]
    %v361 = vld [vmem:[%s359 + $0x8] sm:$0xff]
    %v362 = vld [vmem:[%s359 + $0x10] sm:$0xff]
    %v363 = vld [vmem:[%s359 + $0x18] sm:$0xff]
    %v364 = vld [vmem:[%s359 + $0x20] sm:$0xff]
    %v365 = vld [vmem:[%s359 + $0x28] sm:$0xff]
    %v366 = vld [vmem:[%s359 + $0x30] sm:$0xff]
    %v367 = vld [vmem:[%s359 + $0x38] sm:$0xff]
    %v368 = vld [vmem:[%s359 + $0x40] sm:$0xff]
    %v369 = vld [vmem:[%s359 + $0x48] sm:$0xff]
    %v370 = vld [vmem:[%s359 + $0x50] sm:$0xff]
    %v371 = vld [vmem:[%s359 + $0x58] sm:$0xff]
    %v372 = vld [vmem:[%s359 + $0x60] sm:$0xff]
    %v373 = vld [vmem:[%s359 + $0x68] sm:$0xff]
    %v374 = vld [vmem:[%s359 + $0x70] sm:$0xff]
    %v375 = vld [vmem:[%s359 + $0x78] sm:$0xff]
    %376 = vmatprep.subr.mxu0 0.0
    %377 = vmatpush1.msra.mxu0 %v360
    %378 = vmatprep.subr.mxu0 0.0
    %379 = vmatpush1.msra.mxu0 %v361
    %380 = vmatprep.subr.mxu0 0.0
    %381 = vmatpush1.msra.mxu0 %v362
    %382 = vmatprep.subr.mxu0 0.0
    %383 = vmatpush1.msra.mxu0 %v363
    %384 = vmatprep.subr.mxu0 0.0
    %385 = vmatpush1.msra.mxu0 %v364
    %386 = vmatprep.subr.mxu0 0.0
    %387 = vmatpush1.msra.mxu0 %v365
    %388 = vmatprep.subr.mxu0 0.0
    %389 = vmatpush1.msra.mxu0 %v366
    %390 = vmatprep.subr.mxu0 0.0
    %391 = vmatpush1.msra.mxu0 %v367
    %392 = vmatprep.subr.mxu0 0.0
    %393 = vmatpush1.msra.mxu0 %v368
    %394 = vmatprep.subr.mxu0 0.0
    %395 = vmatpush1.msra.mxu0 %v369
    %396 = vmatprep.subr.mxu0 0.0
    %397 = vmatpush1.msra.mxu0 %v370
    %398 = vmatprep.subr.mxu0 0.0
    %399 = vmatpush1.msra.mxu0 %v371
    %400 = vmatprep.subr.mxu0 0.0
    %401 = vmatpush1.msra.mxu0 %v372
    %402 = vmatprep.subr.mxu0 0.0
    %403 = vmatpush1.msra.mxu0 %v373
    %404 = vmatprep.subr.mxu0 0.0
    %405 = vmatpush1.msra.mxu0 %v374
    %406 = vmatprep.subr.mxu0 0.0
    %407 = vmatpush1.msra.mxu0 %v375
    %408 = vmatprep.subr.mxu0 0.0
    %409 = vmatpush1.msra.mxu0 0.0
    %410 = vmatprep.subr.mxu0 0.0
    %411 = vmatpush1.msra.mxu0 0.0
    %412 = vmatprep.subr.mxu0 0.0
    %413 = vmatpush1.msra.mxu0 0.0
    %414 = vmatprep.subr.mxu0 0.0
    %415 = vmatpush1.msra.mxu0 0.0
    %416 = vmatprep.subr.mxu0 0.0
    %417 = vmatpush1.msra.mxu0 0.0
    %418 = vmatprep.subr.mxu0 0.0
    %419 = vmatpush1.msra.mxu0 0.0
    %420 = vmatprep.subr.mxu0 0.0
    %421 = vmatpush1.msra.mxu0 0.0
    %422 = vmatprep.subr.mxu0 0.0
    %423 = vmatpush1.msra.mxu0 0.0
    %424 = vmatprep.subr.mxu0 0.0
    %425 = vmatpush1.msra.mxu0 0.0
    %426 = vmatprep.subr.mxu0 0.0
    %427 = vmatpush1.msra.mxu0 0.0
    %428 = vmatprep.subr.mxu0 0.0
    %429 = vmatpush1.msra.mxu0 0.0
    %430 = vmatprep.subr.mxu0 0.0
    %431 = vmatpush1.msra.mxu0 0.0
    %432 = vmatprep.subr.mxu0 0.0
    %433 = vmatpush1.msra.mxu0 0.0
    %434 = vmatprep.subr.mxu0 0.0
    %435 = vmatpush1.msra.mxu0 0.0
    %436 = vmatprep.subr.mxu0 0.0
    %437 = vmatpush1.msra.mxu0 0.0
    %438 = vmatprep.subr.mxu0 0.0
    %439 = vmatpush1.msra.mxu0 0.0
    %440 = vmatprep.mubr.f32.mxu0 0.0
    %441 = vmatmul.mubr.f32.gmra.mrb[0].mxu0 %v62
    %v442 = vpop.f32.mrb[0].mxu0
    %v443 = vadd.f32 0.0, %v442
    %v444 = vpop.f32.mrb[0].mxu0
    %445 = vmatprep.mubr.f32.mxu0 0.0
    %446 = vmatmul.mubr.f32.gmra.mrb[0].mxu0 %v63
    %v447 = vpop.f32.mrb[0].mxu0
    %v448 = vadd.f32 0.0, %v447
    %v449 = vpop.f32.mrb[0].mxu0
    %450 = vmatprep.mubr.f32.mxu0 0.0
    %451 = vmatmul.mubr.f32.gmra.mrb[0].mxu0 %v64
    %v452 = vpop.f32.mrb[0].mxu0
    %v453 = vadd.f32 0.0, %v452
    %v454 = vpop.f32.mrb[0].mxu0
    %455 = vmatprep.mubr.f32.mxu0 0.0
    %456 = vmatmul.mubr.f32.gmra.mrb[0].mxu0 %v65
    %v457 = vpop.f32.mrb[0].mxu0
    %v458 = vadd.f32 0.0, %v457
    %v459 = vpop.f32.mrb[0].mxu0
    %460 = vdwg.mxu0
    %vm465 = vcmask 1046528
    %v466 = vrot.slane %v443, 1
    %v467 = vrot.slane %v448, 1
    %v468 = vsel %vm465, %v466, %v467
    %v469 = vrot.slane %v453, 1
    %v470 = vsel %vm465, %v467, %v469
    %v471 = vrot.slane %v458, 1
    %v472 = vsel %vm465, %v469, %v471
    %v477 = vsel %vm465, %v471, 0.0
    %v478 = vsel %vm123, 1, 0
    %v479 = vsel %vm124, 1, 0
    %v480 = vsel %vm125, 1, 0
    %v481 = vsel %vm126, 1, 0
    %vm482 = vcmp.eq.s32.totalorder %v478, 1
    %vm483 = vcmp.eq.s32.totalorder %v479, 1
    %vm484 = vcmp.eq.s32.totalorder %v480, 1
    %vm485 = vcmp.eq.s32.totalorder %v481, 1
    %v486 = vsel %vm482, %v468, 0.0
    %v487 = vsel %vm483, %v470, 0.0
    %v488 = vsel %vm484, %v472, 0.0
    %v489 = vsel %vm485, %v477, 0.0
    %v490 = vadd.f32 %v341, %v486
    %v491 = vadd.f32 %v346, %v487
    %v492 = vadd.f32 %v351, %v488
    %v493 = vadd.f32 %v356, %v489
    %v494 = vld [vmem:[%s2] sm:$0x1]
    %v496 = vlaneseq
    %v497 = vshrl.u32 %v496, 7
    %v498 = vsub.s32 0, %v497
    %v499 = vrot.slane %v494, %v498
    %v501 = vadd.f32 %v490, %v499
    %v502 = vadd.f32 %v491, %v499
    %v503 = vadd.f32 %v492, %v499
    %v504 = vadd.f32 %v493, %v499
    %v505 = vmax.f32 %v501, 0.0
    %v506 = vmax.f32 %v502, 0.0
    %v507 = vmax.f32 %v503, 0.0
    %v508 = vmax.f32 %v504, 0.0
    %s509 = scalar_lea.vmem [#allocation7], 128
    %v510 = vld [vmem:[%s509] sm:$0xff]
    %v511 = vld [vmem:[%s509 + $0x8] sm:$0xff]
    %v512 = vld [vmem:[%s509 + $0x10] sm:$0xff]
    %v513 = vld [vmem:[%s509 + $0x18] sm:$0xff]
    %v514 = vld [vmem:[%s509 + $0x20] sm:$0xff]
    %v515 = vld [vmem:[%s509 + $0x28] sm:$0xff]
    %v516 = vld [vmem:[%s509 + $0x30] sm:$0xff]
    %v517 = vld [vmem:[%s509 + $0x38] sm:$0xff]
    %v518 = vld [vmem:[%s509 + $0x40] sm:$0xff]
    %v519 = vld [vmem:[%s509 + $0x48] sm:$0xff]
    %v520 = vld [vmem:[%s509 + $0x50] sm:$0xff]
    %v521 = vld [vmem:[%s509 + $0x58] sm:$0xff]
    %v522 = vld [vmem:[%s509 + $0x60] sm:$0xff]
    %v523 = vld [vmem:[%s509 + $0x68] sm:$0xff]
    %v524 = vld [vmem:[%s509 + $0x70] sm:$0xff]
    %v525 = vld [vmem:[%s509 + $0x78] sm:$0xff]
    %v526 = vld [vmem:[#allocation7] sm:$0xff]
    %v527 = vld [vmem:[#allocation7 + $0x8] sm:$0xff]
    %v528 = vld [vmem:[#allocation7 + $0x10] sm:$0xff]
    %v529 = vld [vmem:[#allocation7 + $0x18] sm:$0xff]
    %v530 = vld [vmem:[#allocation7 + $0x20] sm:$0xff]
    %v531 = vld [vmem:[#allocation7 + $0x28] sm:$0xff]
    %v532 = vld [vmem:[#allocation7 + $0x30] sm:$0xff]
    %v533 = vld [vmem:[#allocation7 + $0x38] sm:$0xff]
    %v534 = vld [vmem:[#allocation7 + $0x40] sm:$0xff]
    %v535 = vld [vmem:[#allocation7 + $0x48] sm:$0xff]
    %v536 = vld [vmem:[#allocation7 + $0x50] sm:$0xff]
    %v537 = vld [vmem:[#allocation7 + $0x58] sm:$0xff]
    %v538 = vld [vmem:[#allocation7 + $0x60] sm:$0xff]
    %v539 = vld [vmem:[#allocation7 + $0x68] sm:$0xff]
    %v540 = vld [vmem:[#allocation7 + $0x70] sm:$0xff]
    %v541 = vld [vmem:[#allocation7 + $0x78] sm:$0xff]
    %542 = vmatprep.subr.mxu0 0.0
    %543 = vmatpush1.msra.mxu0 %v526
    %544 = vmatprep.subr.mxu0 0.0
    %545 = vmatpush1.msra.mxu0 %v527
    %546 = vmatprep.subr.mxu0 0.0
    %547 = vmatpush1.msra.mxu0 %v528
    %548 = vmatprep.subr.mxu0 0.0
    %549 = vmatpush1.msra.mxu0 %v529
    %550 = vmatprep.subr.mxu0 0.0
    %551 = vmatpush1.msra.mxu0 %v530
    %552 = vmatprep.subr.mxu0 0.0
    %553 = vmatpush1.msra.mxu0 %v531
    %554 = vmatprep.subr.mxu0 0.0
    %555 = vmatpush1.msra.mxu0 %v532
    %556 = vmatprep.subr.mxu0 0.0
    %557 = vmatpush1.msra.mxu0 %v533
    %558 = vmatprep.subr.mxu0 0.0
    %559 = vmatpush1.msra.mxu0 %v534
    %560 = vmatprep.subr.mxu0 0.0
    %561 = vmatpush1.msra.mxu0 %v535
    %562 = vmatprep.subr.mxu0 0.0
    %563 = vmatpush1.msra.mxu0 %v536
    %564 = vmatprep.subr.mxu0 0.0
    %565 = vmatpush1.msra.mxu0 %v537
    %566 = vmatprep.subr.mxu0 0.0
    %567 = vmatpush1.msra.mxu0 %v538
    %568 = vmatprep.subr.mxu0 0.0
    %569 = vmatpush1.msra.mxu0 %v539
    %570 = vmatprep.subr.mxu0 0.0
    %571 = vmatpush1.msra.mxu0 %v540
    %572 = vmatprep.subr.mxu0 0.0
    %573 = vmatpush1.msra.mxu0 %v541
    %574 = vmatprep.subr.mxu0 0.0
    %575 = vmatpush1.msra.mxu0 0.0
    %576 = vmatprep.subr.mxu0 0.0
    %577 = vmatpush1.msra.mxu0 0.0
    %578 = vmatprep.subr.mxu0 0.0
    %579 = vmatpush1.msra.mxu0 0.0
    %580 = vmatprep.subr.mxu0 0.0
    %581 = vmatpush1.msra.mxu0 0.0
    %582 = vmatprep.subr.mxu0 0.0
    %583 = vmatpush1.msra.mxu0 0.0
    %584 = vmatprep.subr.mxu0 0.0
    %585 = vmatpush1.msra.mxu0 0.0
    %586 = vmatprep.subr.mxu0 0.0
    %587 = vmatpush1.msra.mxu0 0.0
    %588 = vmatprep.subr.mxu0 0.0
    %589 = vmatpush1.msra.mxu0 0.0
    %590 = vmatprep.subr.mxu0 0.0
    %591 = vmatpush1.msra.mxu0 0.0
    %592 = vmatprep.subr.mxu0 0.0
    %593 = vmatpush1.msra.mxu0 0.0
    %594 = vmatprep.subr.mxu0 0.0
    %595 = vmatpush1.msra.mxu0 0.0
    %596 = vmatprep.subr.mxu0 0.0
    %597 = vmatpush1.msra.mxu0 0.0
    %598 = vmatprep.subr.mxu0 0.0
    %599 = vmatpush1.msra.mxu0 0.0
    %600 = vmatprep.subr.mxu0 0.0
    %601 = vmatpush1.msra.mxu0 0.0
    %602 = vmatprep.subr.mxu0 0.0
    %603 = vmatpush1.msra.mxu0 0.0
    %604 = vmatprep.subr.mxu0 0.0
    %605 = vmatpush1.msra.mxu0 0.0
    %606 = vmatprep.mubr.f32.mxu0 0.0
    %607 = vmatmul.mubr.f32.gmra.mrb[0].mxu0 %v505
    %v608 = vpop.f32.mrb[0].mxu0
    %v609 = vadd.f32 0.0, %v608
    %v610 = vpop.f32.mrb[0].mxu0
    %611 = vmatprep.mubr.f32.mxu0 0.0
    %612 = vmatmul.mubr.f32.gmra.mrb[0].mxu0 %v506
    %v613 = vpop.f32.mrb[0].mxu0
    %v614 = vadd.f32 0.0, %v613
    %v615 = vpop.f32.mrb[0].mxu0
    %616 = vmatprep.mubr.f32.mxu0 0.0
    %617 = vmatmul.mubr.f32.gmra.mrb[0].mxu0 %v507
    %v618 = vpop.f32.mrb[0].mxu0
    %v619 = vadd.f32 0.0, %v618
    %v620 = vpop.f32.mrb[0].mxu0
    %621 = vmatprep.mubr.f32.mxu0 0.0
    %622 = vmatmul.mubr.f32.gmra.mrb[0].mxu0 %v508
    %v623 = vpop.f32.mrb[0].mxu0
    %v624 = vadd.f32 0.0, %v623
    %v625 = vpop.f32.mrb[0].mxu0
    %626 = vdwg.mxu0
    %v631 = vrot.slane %v609, 7
    %v632 = vrot.slane %v614, 7
    %v633 = vsel %vm249, %v631, %v632
    %v634 = vrot.slane %v619, 7
    %v635 = vsel %vm249, %v632, %v634
    %v636 = vrot.slane %v624, 7
    %v637 = vsel %vm249, %v634, %v636
    %v642 = vsel %vm249, 0.0, %v631
    %v643 = vsel %vm266, %v642, 0.0
    %v644 = vsel %vm267, %v633, 0.0
    %v645 = vsel %vm268, %v635, 0.0
    %v646 = vsel %vm269, %v637, 0.0
    %647 = vmatprep.subr.mxu0 0.0
    %648 = vmatpush1.msra.mxu0 %v510
    %649 = vmatprep.subr.mxu0 0.0
    %650 = vmatpush1.msra.mxu0 %v511
    %651 = vmatprep.subr.mxu0 0.0
    %652 = vmatpush1.msra.mxu0 %v512
    %653 = vmatprep.subr.mxu0 0.0
    %654 = vmatpush1.msra.mxu0 %v513
    %655 = vmatprep.subr.mxu0 0.0
    %656 = vmatpush1.msra.mxu0 %v514
    %657 = vmatprep.subr.mxu0 0.0
    %658 = vmatpush1.msra.mxu0 %v515
    %659 = vmatprep.subr.mxu0 0.0
    %660 = vmatpush1.msra.mxu0 %v516
    %661 = vmatprep.subr.mxu0 0.0
    %662 = vmatpush1.msra.mxu0 %v517
    %663 = vmatprep.subr.mxu0 0.0
    %664 = vmatpush1.msra.mxu0 %v518
    %665 = vmatprep.subr.mxu0 0.0
    %666 = vmatpush1.msra.mxu0 %v519
    %667 = vmatprep.subr.mxu0 0.0
    %668 = vmatpush1.msra.mxu0 %v520
    %669 = vmatprep.subr.mxu0 0.0
    %670 = vmatpush1.msra.mxu0 %v521
    %671 = vmatprep.subr.mxu0 0.0
    %672 = vmatpush1.msra.mxu0 %v522
    %673 = vmatprep.subr.mxu0 0.0
    %674 = vmatpush1.msra.mxu0 %v523
    %675 = vmatprep.subr.mxu0 0.0
    %676 = vmatpush1.msra.mxu0 %v524
    %677 = vmatprep.subr.mxu0 0.0
    %678 = vmatpush1.msra.mxu0 %v525
    %679 = vmatprep.subr.mxu0 0.0
    %680 = vmatpush1.msra.mxu0 0.0
    %681 = vmatprep.subr.mxu0 0.0
    %682 = vmatpush1.msra.mxu0 0.0
    %683 = vmatprep.subr.mxu0 0.0
    %684 = vmatpush1.msra.mxu0 0.0
    %685 = vmatprep.subr.mxu0 0.0
    %686 = vmatpush1.msra.mxu0 0.0
    %687 = vmatprep.subr.mxu0 0.0
    %688 = vmatpush1.msra.mxu0 0.0
    %689 = vmatprep.subr.mxu0 0.0
    %690 = vmatpush1.msra.mxu0 0.0
    %691 = vmatprep.subr.mxu0 0.0
    %692 = vmatpush1.msra.mxu0 0.0
    %693 = vmatprep.subr.mxu0 0.0
    %694 = vmatpush1.msra.mxu0 0.0
    %695 = vmatprep.subr.mxu0 0.0
    %696 = vmatpush1.msra.mxu0 0.0
    %697 = vmatprep.subr.mxu0 0.0
    %698 = vmatpush1.msra.mxu0 0.0
    %699 = vmatprep.subr.mxu0 0.0
    %700 = vmatpush1.msra.mxu0 0.0
    %701 = vmatprep.subr.mxu0 0.0
    %702 = vmatpush1.msra.mxu0 0.0
    %703 = vmatprep.subr.mxu0 0.0
    %704 = vmatpush1.msra.mxu0 0.0
    %705 = vmatprep.subr.mxu0 0.0
    %706 = vmatpush1.msra.mxu0 0.0
    %707 = vmatprep.subr.mxu0 0.0
    %708 = vmatpush1.msra.mxu0 0.0
    %709 = vmatprep.subr.mxu0 0.0
    %710 = vmatpush1.msra.mxu0 0.0
    %711 = vmatprep.mubr.f32.mxu0 0.0
    %712 = vmatmul.mubr.f32.gmra.mrb[0].mxu0 %v505
    %v713 = vpop.f32.mrb[0].mxu0
    %v714 = vadd.f32 %v643, %v713
    %v715 = vpop.f32.mrb[0].mxu0
    %716 = vmatprep.mubr.f32.mxu0 0.0
    %717 = vmatmul.mubr.f32.gmra.mrb[0].mxu0 %v506
    %v718 = vpop.f32.mrb[0].mxu0
    %v719 = vadd.f32 %v644, %v718
    %v720 = vpop.f32.mrb[0].mxu0
    %721 = vmatprep.mubr.f32.mxu0 0.0
    %722 = vmatmul.mubr.f32.gmra.mrb[0].mxu0 %v507
    %v723 = vpop.f32.mrb[0].mxu0
    %v724 = vadd.f32 %v645, %v723
    %v725 = vpop.f32.mrb[0].mxu0
    %726 = vmatprep.mubr.f32.mxu0 0.0
    %727 = vmatmul.mubr.f32.gmra.mrb[0].mxu0 %v508
    %v728 = vpop.f32.mrb[0].mxu0
    %v729 = vadd.f32 %v646, %v728
    %v730 = vpop.f32.mrb[0].mxu0
    %731 = vdwg.mxu0
    %s732 = scalar_lea.vmem [#allocation7], 256
    %v733 = vld [vmem:[%s732] sm:$0xff]
    %v734 = vld [vmem:[%s732 + $0x8] sm:$0xff]
    %v735 = vld [vmem:[%s732 + $0x10] sm:$0xff]
    %v736 = vld [vmem:[%s732 + $0x18] sm:$0xff]
    %v737 = vld [vmem:[%s732 + $0x20] sm:$0xff]
    %v738 = vld [vmem:[%s732 + $0x28] sm:$0xff]
    %v739 = vld [vmem:[%s732 + $0x30] sm:$0xff]
    %v740 = vld [vmem:[%s732 + $0x38] sm:$0xff]
    %v741 = vld [vmem:[%s732 + $0x40] sm:$0xff]
    %v742 = vld [vmem:[%s732 + $0x48] sm:$0xff]
    %v743 = vld [vmem:[%s732 + $0x50] sm:$0xff]
    %v744 = vld [vmem:[%s732 + $0x58] sm:$0xff]
    %v745 = vld [vmem:[%s732 + $0x60] sm:$0xff]
    %v746 = vld [vmem:[%s732 + $0x68] sm:$0xff]
    %v747 = vld [vmem:[%s732 + $0x70] sm:$0xff]
    %v748 = vld [vmem:[%s732 + $0x78] sm:$0xff]
    %749 = vmatprep.subr.mxu0 0.0
    %750 = vmatpush1.msra.mxu0 %v733
    %751 = vmatprep.subr.mxu0 0.0
    %752 = vmatpush1.msra.mxu0 %v734
    %753 = vmatprep.subr.mxu0 0.0
    %754 = vmatpush1.msra.mxu0 %v735
    %755 = vmatprep.subr.mxu0 0.0
    %756 = vmatpush1.msra.mxu0 %v736
    %757 = vmatprep.subr.mxu0 0.0
    %758 = vmatpush1.msra.mxu0 %v737
    %759 = vmatprep.subr.mxu0 0.0
    %760 = vmatpush1.msra.mxu0 %v738
    %761 = vmatprep.subr.mxu0 0.0
    %762 = vmatpush1.msra.mxu0 %v739
    %763 = vmatprep.subr.mxu0 0.0
    %764 = vmatpush1.msra.mxu0 %v740
    %765 = vmatprep.subr.mxu0 0.0
    %766 = vmatpush1.msra.mxu0 %v741
    %767 = vmatprep.subr.mxu0 0.0
    %768 = vmatpush1.msra.mxu0 %v742
    %769 = vmatprep.subr.mxu0 0.0
    %770 = vmatpush1.msra.mxu0 %v743
    %771 = vmatprep.subr.mxu0 0.0
    %772 = vmatpush1.msra.mxu0 %v744
    %773 = vmatprep.subr.mxu0 0.0
    %774 = vmatpush1.msra.mxu0 %v745
    %775 = vmatprep.subr.mxu0 0.0
    %776 = vmatpush1.msra.mxu0 %v746
    %777 = vmatprep.subr.mxu0 0.0
    %778 = vmatpush1.msra.mxu0 %v747
    %779 = vmatprep.subr.mxu0 0.0
    %780 = vmatpush1.msra.mxu0 %v748
    %781 = vmatprep.subr.mxu0 0.0
    %782 = vmatpush1.msra.mxu0 0.0
    %783 = vmatprep.subr.mxu0 0.0
    %784 = vmatpush1.msra.mxu0 0.0
    %785 = vmatprep.subr.mxu0 0.0
    %786 = vmatpush1.msra.mxu0 0.0
    %787 = vmatprep.subr.mxu0 0.0
    %788 = vmatpush1.msra.mxu0 0.0
    %789 = vmatprep.subr.mxu0 0.0
    %790 = vmatpush1.msra.mxu0 0.0
    %791 = vmatprep.subr.mxu0 0.0
    %792 = vmatpush1.msra.mxu0 0.0
    %793 = vmatprep.subr.mxu0 0.0
    %794 = vmatpush1.msra.mxu0 0.0
    %795 = vmatprep.subr.mxu0 0.0
    %796 = vmatpush1.msra.mxu0 0.0
    %797 = vmatprep.subr.mxu0 0.0
    %798 = vmatpush1.msra.mxu0 0.0
    %799 = vmatprep.subr.mxu0 0.0
    %800 = vmatpush1.msra.mxu0 0.0
    %801 = vmatprep.subr.mxu0 0.0
    %802 = vmatpush1.msra.mxu0 0.0
    %803 = vmatprep.subr.mxu0 0.0
    %804 = vmatpush1.msra.mxu0 0.0
    %805 = vmatprep.subr.mxu0 0.0
    %806 = vmatpush1.msra.mxu0 0.0
    %807 = vmatprep.subr.mxu0 0.0
    %808 = vmatpush1.msra.mxu0 0.0
    %809 = vmatprep.subr.mxu0 0.0
    %810 = vmatpush1.msra.mxu0 0.0
    %811 = vmatprep.subr.mxu0 0.0
    %812 = vmatpush1.msra.mxu0 0.0
    %813 = vmatprep.mubr.f32.mxu0 0.0
    %814 = vmatmul.mubr.f32.gmra.mrb[0].mxu0 %v505
    %v815 = vpop.f32.mrb[0].mxu0
    %v816 = vadd.f32 0.0, %v815
    %v817 = vpop.f32.mrb[0].mxu0
    %818 = vmatprep.mubr.f32.mxu0 0.0
    %819 = vmatmul.mubr.f32.gmra.mrb[0].mxu0 %v506
    %v820 = vpop.f32.mrb[0].mxu0
    %v821 = vadd.f32 0.0, %v820
    %v822 = vpop.f32.mrb[0].mxu0
    %823 = vmatprep.mubr.f32.mxu0 0.0
    %824 = vmatmul.mubr.f32.gmra.mrb[0].mxu0 %v507
    %v825 = vpop.f32.mrb[0].mxu0
    %v826 = vadd.f32 0.0, %v825
    %v827 = vpop.f32.mrb[0].mxu0
    %828 = vmatprep.mubr.f32.mxu0 0.0
    %829 = vmatmul.mubr.f32.gmra.mrb[0].mxu0 %v508
    %v830 = vpop.f32.mrb[0].mxu0
    %v831 = vadd.f32 0.0, %v830
    %v832 = vpop.f32.mrb[0].mxu0
    %833 = vdwg.mxu0
    %v838 = vrot.slane %v816, 1
    %v839 = vrot.slane %v821, 1
    %v840 = vsel %vm465, %v838, %v839
    %v841 = vrot.slane %v826, 1
    %v842 = vsel %vm465, %v839, %v841
    %v843 = vrot.slane %v831, 1
    %v844 = vsel %vm465, %v841, %v843
    %v849 = vsel %vm465, %v843, 0.0
    %v850 = vsel %vm482, %v840, 0.0
    %v851 = vsel %vm483, %v842, 0.0
    %v852 = vsel %vm484, %v844, 0.0
    %v853 = vsel %vm485, %v849, 0.0
    %v854 = vadd.f32 %v714, %v850
    %v855 = vadd.f32 %v719, %v851
    %v856 = vadd.f32 %v724, %v852
    %v857 = vadd.f32 %v729, %v853
    %v858 = vld [vmem:[%s4] sm:$0x1]
    %v860 = vlaneseq
    %v861 = vshrl.u32 %v860, 7
    %v862 = vsub.s32 0, %v861
    %v863 = vrot.slane %v858, %v862
    %v865 = vadd.f32 %v854, %v863
    %v866 = vadd.f32 %v855, %v863
    %v867 = vadd.f32 %v856, %v863
    %v868 = vadd.f32 %v857, %v863
    %v869 = vadd.f32 %v865, %v62
    %v870 = vadd.f32 %v866, %v63
    %v871 = vadd.f32 %v867, %v64
    %v872 = vadd.f32 %v868, %v65
    %v873 = vmax.f32 %v869, 0.0
    %v874 = vmax.f32 %v870, 0.0
    %v875 = vmax.f32 %v871, 0.0
    %v876 = vmax.f32 %v872, 0.0
    %877 = vst [vmem:[#allocation8] sm:$0xff] %v873
    %878 = vst [vmem:[#allocation8 + $0x8] sm:$0xff] %v874
    %879 = vst [vmem:[#allocation8 + $0x10] sm:$0xff] %v875
    %880 = vst [vmem:[#allocation8 + $0x18] sm:$0xff] %v876
    // Predicated region
    $region34: #{tpu_custom_call.1} parent=1 // pred_check
      _
    $region35: #{tpu_custom_call.1} parent=1 // pred_check_branch
      %882 = sbr.rel (0) target = $region37
    $region36: #{tpu_custom_call.1} parent=1 // pred_region
      %s884 = ssub.s32 512, 512
      %885 = vsyncadd [#allocation4], %s884
      %s886 = sshll.u32 [#allocation8], 4
      %s887 = int_to_ptr.vmem [resolvable:$true] %s886
      %892 = dma.vmem_to_hbm [thread:$0]  %s887, 512, %s5, [#allocation4], 128, 128, 8
    $region37: #{tpu_custom_call.1} parent=1 // pred_fallthru
      _
    // Predicated region
    $region38: #{tpu_custom_call.1} parent=1 // pred_check
      _
    $region39: #{tpu_custom_call.1} parent=1 // pred_check_branch
      %894 = sbr.rel (0) target = $region41
    $region40: #{tpu_custom_call.1} parent=1 // pred_region
      %895 = dma.done [#allocation4], 512
    $region41: #{tpu_custom_call.1} parent=1 // pred_fallthru
      _
    %896 = vsyncpa [#allocation3], 1
    %897 = vsyncpa [#allocation6], 1
    %898 = vsyncpa [#allocation4], 1

</llo_original>
